<compile_context>
chip_gen: v6e
topology: v6e:2x2x1
jax: 0.10.0
libtpu: 0.0.40
codegen_flags: <defaults>
</compile_context>

<pallas_src>
import functools

import jax
import jax.numpy as jnp
from jax import lax
from jax.experimental import pallas as pl
from jax.experimental.pallas import tpu as pltpu


# ----------------------------------------------------------------------------
# Kernel 1: word + position embedding (HBM row gather, no full-table residency)
# ----------------------------------------------------------------------------
def _embed_kernel(tok_ref, pos_ref, word_hbm, out_ref, rows, sems, *, seq_len):
    n = pl.program_id(0)

    # Issue one row-gather DMA per token (each with its own completion sem).
    # TODO(synk): for very large S, bound the number of in-flight DMAs.
    @pl.loop(0, seq_len)
    def _(s):
        pltpu.make_async_copy(word_hbm.at[tok_ref[n, s]], rows.at[s],
                              sems.at[s]).start()

    @pl.loop(0, seq_len)
    def _(s):
        pltpu.make_async_copy(word_hbm.at[tok_ref[n, s]], rows.at[s],
                              sems.at[s]).wait()

    # dropout after embedding is identity (eval mode); one full-tile store.
    out_ref[0] = rows[...] + pos_ref[...]


def embed(tokens, word_tbl, pos_tbl):
    N, S = tokens.shape
    _, E = word_tbl.shape
    kernel = functools.partial(_embed_kernel, seq_len=S)
    return pl.pallas_call(
        kernel,
        out_shape=jax.ShapeDtypeStruct((N, S, E), word_tbl.dtype),
        grid_spec=pltpu.PrefetchScalarGridSpec(
            num_scalar_prefetch=1,                       # token ids -> SMEM
            grid=(N,),
            in_specs=[
                pl.BlockSpec((S, E), lambda n, tok: (0, 0)),   # first S pos rows
                pl.BlockSpec(memory_space=pl.ANY),             # word table in HBM
            ],
            out_specs=pl.BlockSpec((1, S, E), lambda n, tok: (n, 0, 0)),
            scratch_shapes=[
                pltpu.VMEM((S, E), word_tbl.dtype),            # gathered rows
                pltpu.SemaphoreType.DMA((S,)),
            ],
        ),
        compiler_params=pltpu.CompilerParams(
            dimension_semantics=("parallel",)),
    )(tokens, pos_tbl, word_tbl)


# ----------------------------------------------------------------------------
# Kernel 2: the full transformer stack (all layers fused, one pallas_call)
# ----------------------------------------------------------------------------
def _layernorm(x, gamma, beta, eps=1e-5):
    mu = jnp.mean(x, axis=-1, keepdims=True)
    var = jnp.mean((x - mu) ** 2, axis=-1, keepdims=True)
    return (x - mu) * lax.rsqrt(var + eps) * gamma + beta


def _stack_kernel(x_ref, mask_ref,
                  wo_ref, g1_ref, bt1_ref,
                  w1_ref, bb1_ref, w2_ref, bb2_ref,
                  g2_ref, bt2_ref,
                  out_ref, *, heads, head_dim, embed_size):
    l = pl.program_id(1)

    # Layer 0: load embedded activations into the resident output block
    # (output block index is constant over the layer axis -> stays in VMEM).
    @pl.when(l == 0)
    def _():
        out_ref[...] = x_ref[...]

    x = out_ref[...].astype(jnp.float32)           # (Bt, S, E)
    bt, seq, _ = x.shape
    h, d = heads, head_dim
    inv_scale = float(embed_size) ** -0.5

    # ---- self attention (queries = keys = values = x, per reference forward) --
    xh = x.reshape(bt, seq, h, d)
    # energy[b,h,q,k] = sum_d xh[b,q,h,d] * xh[b,k,h,d]  (all heads in one dot)
    energy = jnp.einsum('bqhd,bkhd->bhqk', xh, xh,
                        preferred_element_type=jnp.float32)
    mask = mask_ref[...]                           # (Bt, 1, S); 0 => masked key
    energy = jnp.where(mask[:, None, :, :] == 0, jnp.float32(-1e20), energy)
    energy = energy * inv_scale                    # mask BEFORE scaling, as ref
    m = jnp.max(energy, axis=-1, keepdims=True)
    p = jnp.exp(energy - m)
    attn = p * pl.reciprocal(jnp.sum(p, axis=-1, keepdims=True), approx=True)
    # reference einsum 'nhql,nlhd->nlhd' (faithful to upstream):
    #   out[b,l,h,d] = values[b,l,h,d] * sum_q attention[b,h,q,l]
    attw = jnp.sum(attn, axis=2)                   # (Bt, H, S)
    attn_out = xh * jnp.transpose(attw, (0, 2, 1))[..., None]
    attn_out = attn_out.reshape(bt * seq, embed_size)

    x2d = x.reshape(bt * seq, embed_size)

    # fc_out (no bias) — bf16 weights, f32 accumulation on the MXU
    proj = jnp.dot(attn_out.astype(jnp.bfloat16), wo_ref[0],
                   preferred_element_type=jnp.float32)

    # residual + norm1 (dropout = identity)
    h1 = _layernorm(proj + x2d, g1_ref[0], bt1_ref[0])

    # feed forward: Linear(E, F) -> ReLU -> Linear(F, E)
    ff = jnp.dot(h1.astype(jnp.bfloat16), w1_ref[0],
                 preferred_element_type=jnp.float32) + bb1_ref[0]
    ff = jnp.maximum(ff, 0.0)
    ff = jnp.dot(ff.astype(jnp.bfloat16), w2_ref[0],
                 preferred_element_type=jnp.float32) + bb2_ref[0]

    # residual + norm2 (dropout = identity)
    out = _layernorm(ff + h1, g2_ref[0], bt2_ref[0])
    out_ref[...] = out.reshape(bt, seq, embed_size).astype(out_ref.dtype)


def encoder_stack(x, mask, params, heads, *, batch_tile=1):
    N, S, E = x.shape
    L = params["wo_t"].shape[0]
    F = params["w1_t"].shape[2]
    D = E // heads
    Bt = batch_tile
    assert N % Bt == 0, "batch_tile must divide N"

    kernel = functools.partial(_stack_kernel, heads=heads, head_dim=D,
                               embed_size=E)

    def wspec(*shape):                              # layer-stacked param block
        return pl.BlockSpec((1,) + shape, lambda b, l: (l, 0, 0))

    return pl.pallas_call(
        kernel,
        out_shape=jax.ShapeDtypeStruct((N, S, E), x.dtype),
        grid_spec=pltpu.PrefetchScalarGridSpec(
            num_scalar_prefetch=0,
            grid=(N // Bt, L),                      # layer axis innermost
            in_specs=[
                pl.BlockSpec((Bt, S, E), lambda b, l: (b, 0, 0)),   # activations
                pl.BlockSpec((Bt, 1, S), lambda b, l: (b, 0, 0)),   # key mask
                wspec(E, E),                        # W_o^T   (bf16)
                wspec(1, E), wspec(1, E),           # norm1 gamma / beta
                wspec(E, F), wspec(1, F),           # W1^T    (bf16), b1
                wspec(F, E), wspec(1, E),           # W2^T    (bf16), b2
                wspec(1, E), wspec(1, E),           # norm2 gamma / beta
            ],
            out_specs=pl.BlockSpec((Bt, S, E), lambda b, l: (b, 0, 0)),
        ),
        compiler_params=pltpu.CompilerParams(
            dimension_semantics=("parallel", "arbitrary"),
            # Headroom below physical VMEM on all generations (64 MiB on v7x).
            vmem_limit_bytes=48 * 1024 * 1024,
        ),
    )(x, mask, params["wo_t"], params["g1"], params["bt1"],
      params["w1_t"], params["bb1"], params["w2_t"], params["bb2"],
      params["g2"], params["bt2"])


# ----------------------------------------------------------------------------
# Parameter init (deterministic, synthetic) + Encoder forward
# ----------------------------------------------------------------------------
def init_encoder_params(key, vocab, embed_size, num_layers, forward_expansion,
                        max_length):
    E = embed_size
    F = E * forward_expansion
    L = num_layers
    ks = jax.random.split(key, 2 + 3 * L)
    wo, w1, w2 = [], [], []
    idx = 2
    for _ in range(L):
        wo.append(jax.random.normal(ks[idx], (E, E), jnp.float32) * 0.05); idx += 1
        w1.append(jax.random.normal(ks[idx], (F, E), jnp.float32) * 0.05); idx += 1
        w2.append(jax.random.normal(ks[idx], (E, F), jnp.float32) * 0.05); idx += 1
    # NOTE: SelfAttention's per-head Linear(head_dim, head_dim) weights exist in
    # __init__ but are never used in the reference forward -> omitted.
    return {
        "word": jax.random.normal(ks[0], (vocab, E), jnp.float32) * 0.02,
        "pos": jax.random.normal(ks[1], (max_length, E), jnp.float32) * 0.02,
        # layer-stacked, pre-transposed, bf16 matmul weights
        "wo_t": jnp.stack([w.T for w in wo]).astype(jnp.bfloat16),   # (L, E, E)
        "w1_t": jnp.stack([w.T for w in w1]).astype(jnp.bfloat16),   # (L, E, F)
        "w2_t": jnp.stack([w.T for w in w2]).astype(jnp.bfloat16),   # (L, F, E)
        "g1": jnp.ones((L, 1, E), jnp.float32),
        "bt1": jnp.zeros((L, 1, E), jnp.float32),
        "bb1": jnp.zeros((L, 1, F), jnp.float32),
        "bb2": jnp.zeros((L, 1, E), jnp.float32),
        "g2": jnp.ones((L, 1, E), jnp.float32),
        "bt2": jnp.zeros((L, 1, E), jnp.float32),
    }


def encoder_forward(tokens, mask, params, heads, *, batch_tile=1):
    out = embed(tokens, params["word"], params["pos"])
    return encoder_stack(out, mask, params, heads, batch_tile=batch_tile)


if __name__ == "__main__":
    # small, module-consistent shapes
    N, S = 2, 8
    embed_size, heads, num_layers, forward_expansion = 32, 4, 2, 2
    src_vocab_size, max_length = 50, 16

    key = jax.random.PRNGKey(0)
    k_tok, k_par = jax.random.split(key)

    # token ids are generated in-range; out-of-range ids would be an
    # (unchecked) HBM gather from a wrong row — validate ids outside the kernel.
    tokens = jax.random.randint(k_tok, (N, S), 0, src_vocab_size, dtype=jnp.int32)
    # key-padding mask, shape (N, 1, S); 0 => masked (fill with -1e20)
    mask = jnp.ones((N, 1, S), jnp.int32).at[1, 0, S - 1].set(0)

    params = init_encoder_params(k_par, src_vocab_size, embed_size, num_layers,
                                 forward_expansion, max_length)

    out = encoder_forward(tokens, mask, params, heads, batch_tile=1)
    out = jax.block_until_ready(out)
    assert out.shape == (N, S, embed_size) and out.dtype == jnp.float32
    assert bool(jnp.all(jnp.isfinite(out)))
    print("KERNEL_OK")
</pallas_src>

<mosaic_0001>
module attributes {stable_mosaic.version = 11 : i64} {
  func.func @_embed_kernel(%arg0: i32, %arg1: memref<2x8xi32, #tpu.memory_space<smem>>, %arg2: memref<8x32xf32, #tpu.memory_space<vmem>>, %arg3: memref<50x32xf32, #tpu.memory_space<any>>, %arg4: memref<1x8x32xf32, #tpu.memory_space<vmem>>, %arg5: memref<8x32xf32, #tpu.memory_space<vmem>>, %arg6: memref<8x!tpu.dma_semaphore, #tpu.memory_space<semaphore_mem>>) attributes {dimension_semantics = [#tpu.dimension_semantics<parallel>], iteration_bounds = array<i64: 2>, scalar_prefetch = 1 : i64, scratch_operands = 2 : i64, tpu.core_type = #tpu.core_type<tc>, window_params = [{transform_indices = @transform_0, window_bounds = array<i64: 8, 32>}, {}, {transform_indices = @transform_2, window_bounds = array<i64: 1, 8, 32>}]} {
    %c0_i32 = arith.constant 0 : i32
    %c8_i32 = arith.constant 8 : i32
    %0 = arith.addi %c0_i32, %c8_i32 : i32
    %c1_i32 = arith.constant 1 : i32
    scf.for %arg7 = %c0_i32 to %0 step %c1_i32  : i32 {
      %c1_i32_11 = arith.constant 1 : i32
      %8 = arith.muli %arg7, %c1_i32_11 : i32
      %c0_i32_12 = arith.constant 0 : i32
      %9 = arith.addi %c0_i32_12, %8 : i32
      %10 = arith.index_cast %arg0 : i32 to index
      %11 = arith.index_cast %9 : i32 to index
      %12 = memref.load %arg1[%10, %11] : memref<2x8xi32, #tpu.memory_space<smem>>
      %c0_i32_13 = arith.constant 0 : i32
      %13 = tpu.memref_slice %arg3[%12, %c0_i32_13] : memref<50x32xf32, #tpu.memory_space<any>> -> memref<1x32xf32, #tpu.memory_space<any>>
      %14 = tpu.memref_squeeze %13 : memref<1x32xf32, #tpu.memory_space<any>> -> memref<32xf32, #tpu.memory_space<any>>
      %c0_i32_14 = arith.constant 0 : i32
      %15 = tpu.memref_slice %arg5[%9, %c0_i32_14] : memref<8x32xf32, #tpu.memory_space<vmem>> -> memref<1x32xf32, #tpu.memory_space<vmem>>
      %16 = tpu.memref_squeeze %15 : memref<1x32xf32, #tpu.memory_space<vmem>> -> memref<32xf32, #tpu.memory_space<vmem>>
      %17 = tpu.memref_slice %arg6[%9] : memref<8x!tpu.dma_semaphore, #tpu.memory_space<semaphore_mem>> -> memref<1x!tpu.dma_semaphore, #tpu.memory_space<semaphore_mem>>
      %18 = tpu.memref_squeeze %17 : memref<1x!tpu.dma_semaphore, #tpu.memory_space<semaphore_mem>> -> memref<!tpu.dma_semaphore, #tpu.memory_space<semaphore_mem>>
      tpu.enqueue_dma source(%14 : memref<32xf32, #tpu.memory_space<any>>) target(%16 : memref<32xf32, #tpu.memory_space<vmem>>) target_semaphore(%18 : memref<!tpu.dma_semaphore, #tpu.memory_space<semaphore_mem>>)
    }
    %c8_i32_0 = arith.constant 8 : i32
    %c0_i32_1 = arith.constant 0 : i32
    %c8_i32_2 = arith.constant 8 : i32
    %1 = arith.addi %c0_i32_1, %c8_i32_2 : i32
    %c1_i32_3 = arith.constant 1 : i32
    scf.for %arg7 = %c0_i32_1 to %1 step %c1_i32_3  : i32 {
      %c1_i32_11 = arith.constant 1 : i32
      %8 = arith.muli %arg7, %c1_i32_11 : i32
      %c0_i32_12 = arith.constant 0 : i32
      %9 = arith.addi %c0_i32_12, %8 : i32
      %10 = arith.index_cast %arg0 : i32 to index
      %11 = arith.index_cast %9 : i32 to index
      %12 = memref.load %arg1[%10, %11] : memref<2x8xi32, #tpu.memory_space<smem>>
      %c0_i32_13 = arith.constant 0 : i32
      %13 = tpu.memref_slice %arg3[%12, %c0_i32_13] : memref<50x32xf32, #tpu.memory_space<any>> -> memref<1x32xf32, #tpu.memory_space<any>>
      %14 = tpu.memref_squeeze %13 : memref<1x32xf32, #tpu.memory_space<any>> -> memref<32xf32, #tpu.memory_space<any>>
      %c0_i32_14 = arith.constant 0 : i32
      %15 = tpu.memref_slice %arg5[%9, %c0_i32_14] : memref<8x32xf32, #tpu.memory_space<vmem>> -> memref<1x32xf32, #tpu.memory_space<vmem>>
      %16 = tpu.memref_squeeze %15 : memref<1x32xf32, #tpu.memory_space<vmem>> -> memref<32xf32, #tpu.memory_space<vmem>>
      %17 = tpu.memref_slice %arg6[%9] : memref<8x!tpu.dma_semaphore, #tpu.memory_space<semaphore_mem>> -> memref<1x!tpu.dma_semaphore, #tpu.memory_space<semaphore_mem>>
      %18 = tpu.memref_squeeze %17 : memref<1x!tpu.dma_semaphore, #tpu.memory_space<semaphore_mem>> -> memref<!tpu.dma_semaphore, #tpu.memory_space<semaphore_mem>>
      tpu.wait_dma2 semaphore(%18 : memref<!tpu.dma_semaphore, #tpu.memory_space<semaphore_mem>>) src(%14 : memref<32xf32, #tpu.memory_space<any>>) dst(%16 : memref<32xf32, #tpu.memory_space<vmem>>)
    }
    %c8_i32_4 = arith.constant 8 : i32
    %c0 = arith.constant 0 : index
    %c0_5 = arith.constant 0 : index
    %2 = vector.load %arg5[%c0, %c0_5] : memref<8x32xf32, #tpu.memory_space<vmem>>, vector<8x32xf32>
    %c0_6 = arith.constant 0 : index
    %c0_7 = arith.constant 0 : index
    %3 = vector.load %arg2[%c0_6, %c0_7] : memref<8x32xf32, #tpu.memory_space<vmem>>, vector<8x32xf32>
    %4 = arith.addf %2, %3 : vector<8x32xf32>
    %c0_8 = arith.constant 0 : index
    %c0_9 = arith.constant 0 : index
    %c0_10 = arith.constant 0 : index
    %5 = vector.load %arg4[%c0_8, %c0_9, %c0_10] : memref<1x8x32xf32, #tpu.memory_space<vmem>>, vector<1x8x32xf32>
    %6 = vector.shape_cast %5 : vector<1x8x32xf32> to vector<8x32xf32>
    %7 = vector.shape_cast %4 : vector<8x32xf32> to vector<1x8x32xf32>
    tpu.vector_store %arg4[%c0_8, %c0_9, %c0_10], %7 {strides = array<i32>} : memref<1x8x32xf32, #tpu.memory_space<vmem>>, vector<1x8x32xf32>,
    return
  }
  func.func @transform_0(%arg0: i32, %arg1: memref<2x8xi32, #tpu.memory_space<smem>>) -> (i32, i32) {
    %c0_i32 = arith.constant 0 : i32
    %c0_i32_0 = arith.constant 0 : i32
    %c0_i32_1 = arith.constant 0 : i32
    return %c0_i32, %c0_i32_0 : i32, i32
  }
  func.func @transform_2(%arg0: i32, %arg1: memref<2x8xi32, #tpu.memory_space<smem>>) -> (i32, i32, i32) {
    %c0_i32 = arith.constant 0 : i32
    %c0_i32_0 = arith.constant 0 : i32
    %c0_i32_1 = arith.constant 0 : i32
    return %arg0, %c0_i32, %c0_i32_0 : i32, i32, i32
  }
}

</mosaic_0001>

<llo_original>
// kernel: tpu_custom_call.1
$region0: #{tpu_custom_call.1}
  #allocation0 [shape = 'u32[]', space=smem, size = 0x4, offset = 0x4, fixed_abs, tag = 'smem constant byte address 0x4 - core index']
  #allocation1 [shape = 'u32[144,128]{1,0:T(1,128)}', space=vmem, size = 0x12000, scoped, tag = 'internal scratch']
  #allocation2 [shape = 'f32[8,32]{1,0:T(8,128)}', space=vmem, size = 0x1000, scoped, tag = 'scratch operand']
  #allocation3 [shape = 's32[8]{0}', space=sflag, size = 0x20, scoped, tag = 'scratch operand']
  #allocation4 [shape = 's32[1]{0}', space=sflag, size = 0x4, scoped, tag = 'scoped memory for tpu_custom_call.1']
  #allocation5 [shape = 'u8[1024]{0}', space=smem, size = 0x400, scoped, tag = 'prefetched SMEM operand 0']
  #allocation8 [shape = 's32[]', space=sflag, size = 0x4, offset = 0, fixed_abs, tag = 'sflag constant byte address 0x0 - dummy sync flag']
  %s0 = inlined_call_operand.vmem [shape: s32[2,8], index: 0, kind: input, shape index: {}]
  %s1 = inlined_call_operand.vmem [shape: f32[16,32], index: 1, kind: input, shape index: {}]
  %s2 = inlined_call_operand.vmem [shape: f32[50,32], index: 2, kind: input, shape index: {}]
  %s3 = inlined_call_operand.hbm [shape: f32[2,8,32], index: 3, kind: output, shape index: {}]
  %s4 = sld [smem:[#allocation0]]
  $region81: #{tpu_custom_call.1} parent=0
    _
  %s6 = ssub.s32 1, %s4
  %s7 = scalar_select 0, %s6, %s4
  %s8 = sshll.u32 %s0, 4
  %s9 = int_to_ptr.vmem [resolvable:$true] %s8
  %11 = dma.vmem_to_smem %s9, 32, [#allocation5], [#allocation4]
  %12 = dma.done [#allocation4], 32
  %13 = sfence
  $region1: #{tpu_custom_call.1} parent=0
    #allocation6 [shape = 'u8[8192]{0}', space=vmem, size = 0x2000, scoped, tag = 'output window, operand 0']
    #allocation7 [shape = 's32[2]{0}', space=sflag, size = 0x8, scoped, tag = 'scoped memory for tpu_custom_call.1']
    %14 = vsyncpa [#allocation7], 0
    %s15 = scalar_lea.sflag [#allocation7], 1
    %16 = vsyncpa %s15, 0
    loop: start=0, step=1, limit=4
    $region2: #{tpu_custom_call.1} parent=1 // loop_pre_header
      _
    $region3: #{tpu_custom_call.1} parent=1 // loop_header
      %s18 = sphi 0, %s22
      %p19 = scmp.ge.s32.totalorder %s18, 4
      %s26 = sphi 0, %s26
      %s28 = sphi 0, %s26
      %s29 = sphi 0, %s28
      %s43 = sphi 0, %s29
      %s49 = sphi 0, %s51
      %s52 = sphi 0, %s49
      %s53 = sphi 0, %s52
      %s69 = sphi 0, %s53
    $region4: #{tpu_custom_call.1} parent=1 // loop_header_branch
      %21 = sbr.rel (%p19) target = $region8
    $region5: #{tpu_custom_call.1} parent=1 // loop_body
      %s23 = ssub.s32 %s18, 1
      %s24 = ssub.s32 %s18, 2
      %s25 = sadd.s32 %s18, 1
      %s27 = sadd.s32 %s26, 1
      %p30 = scmp.eq.s32.totalorder %s18, 1
      %p31 = scmp.ne.s32.totalorder %s26, %s28
      %p32 = scmp.eq.s32.totalorder %s18, 0
      %p33 = por %p31, %p32
      %p34 = scmp.ne.s32.totalorder %s26, %s28
      %p35 = scmp.eq.s32.totalorder %s23, 1
      %p36 = por %p34, %p35
      %p37 = scmp.ne.s32.totalorder %s28, %s29
      %p38 = scmp.eq.s32.totalorder %s23, 0
      %p39 = por %p37, %p38
      %p40 = scmp.ne.s32.totalorder %s28, %s29
      %p41 = scmp.eq.s32.totalorder %s24, 1
      %p42 = por %p40, %p41
      %p44 = scmp.ne.s32.totalorder %s29, %s43
      %p45 = scmp.eq.s32.totalorder %s24, 0
      %p46 = por %p44, %p45
      %s47 = ssub.s32 %s18, %s25
      %p48 = scmp.eq.s32.totalorder %s47, 0
      %s50 = sadd.s32 %s49, 1
      %s51 = scalar_select %p48, %s49, %s50
      %p54 = pneg %p48
      %p55 = scmp.eq.s32.totalorder %s18, 1
      %p56 = por %p54, %p55
      %p57 = scmp.ne.s32.totalorder %s49, %s52
      %p58 = scmp.eq.s32.totalorder %s18, 0
      %p59 = por %p57, %p58
      %p60 = scmp.ne.s32.totalorder %s49, %s52
      %p61 = scmp.eq.s32.totalorder %s23, 1
      %p62 = por %p60, %p61
      %p63 = scmp.ne.s32.totalorder %s52, %s53
      %p64 = scmp.eq.s32.totalorder %s23, 0
      %p65 = por %p63, %p64
      %p66 = scmp.ne.s32.totalorder %s52, %s53
      %p67 = scmp.eq.s32.totalorder %s24, 1
      %p68 = por %p66, %p67
      %p70 = scmp.ne.s32.totalorder %s53, %s69
      %p71 = scmp.eq.s32.totalorder %s24, 0
      %p72 = por %p70, %p71
      %p73 = scmp.le.s32.totalorder 1, %s18
      %p74 = scmp.lt.s32.totalorder %s18, 3
      %p75 = pnand %p73, %p74
      %p76 = pneg %p75
      // Predicated region
      $region9: #{tpu_custom_call.1} parent=5 // pred_check
        _
      $region10: #{tpu_custom_call.1} parent=5 // pred_check_branch
        %78 = sbr.rel (%p75) target = $region12
      $region11: #{tpu_custom_call.1} parent=5 // pred_region
        %s79 = ssub.s32 %s18, 1
        // Predicated region
        $region13: #{tpu_custom_call.1} parent=11 // pred_check
          %p80 = pneg %p39
        $region14: #{tpu_custom_call.1} parent=11 // pred_check_branch
          %82 = sbr.rel (%p80) target = $region16
        $region15: #{tpu_custom_call.1} parent=11 // pred_region
          _
        $region16: #{tpu_custom_call.1} parent=11 // pred_fallthru
          _
      $region12: #{tpu_custom_call.1} parent=5 // pred_fallthru
        _
      %p83 = scmp.lt.s32.totalorder %s18, 2
      // Predicated region
      $region17: #{tpu_custom_call.1} parent=5 // pred_check
        %p84 = pneg %p83
      $region18: #{tpu_custom_call.1} parent=5 // pred_check_branch
        %86 = sbr.rel (%p84) target = $region20
      $region19: #{tpu_custom_call.1} parent=5 // pred_region
        _
      $region20: #{tpu_custom_call.1} parent=5 // pred_fallthru
        _
      %p87 = scmp.le.s32.totalorder 1, %s18
      %p88 = scmp.lt.s32.totalorder %s18, 3
      %p89 = pnand %p87, %p88
      %p90 = pneg %p89
      // Predicated region
      $region21: #{tpu_custom_call.1} parent=5 // pred_check
        _
      $region22: #{tpu_custom_call.1} parent=5 // pred_check_branch
        %92 = sbr.rel (%p89) target = $region24
      $region23: #{tpu_custom_call.1} parent=5 // pred_region
        %s93 = ssub.s32 %s18, 1
        %p94 = pneg %p39
        %p95 = pneg %p36
        %p96 = pneg %p65
        %p97 = pneg %p62
        %s98 = sand.u32 %s52, 1
        %s99 = scalar_lea.sflag [#allocation7], %s98
        %s100 = sand.u32 %s52, 1
        %s101 = smul.addr %s100, 8
        %s102 = scalar_lea.vmem [#allocation6], %s101
        loop: start=0, step=1, limit=8
        $region25: #{tpu_custom_call.1} parent=23 // loop_pre_header
          _
        $region26: #{tpu_custom_call.1} parent=23 // loop_header
          %s104 = sphi 0, %s108
          %p105 = scmp.ge.s32.totalorder %s104, 8
        $region27: #{tpu_custom_call.1} parent=23 // loop_header_branch
          %107 = sbr.rel (%p105) target = $region31
        $region28: #{tpu_custom_call.1} parent=23 // loop_body
          %s109 = sshra.s32 %s104, 7
          %s110 = sand.u32 %s104, 127
          %s111 = sadd.s32 %s109, %s23
          %s112 = smul.u32 %s111, 128
          %s113 = sshra.s32 %s104, 7
          %s114 = sand.u32 %s104, 127
          %s115 = sadd.s32 %s112, %s114
          %s116 = sld [smem:[#allocation5 + %s115]]
          %s117 = scalar_lea.vmem %s2, %s116
          %s118 = scalar_lea.vmem [#allocation2], %s104
          %s119 = scalar_lea.sflag [#allocation3], %s104
          %p121 = scmp.lt.u32.totalorder 1, 8
          %p122 = pneg %p121
          // Predicated region
          $region32: #{tpu_custom_call.1} parent=28 // pred_check
            _
          $region33: #{tpu_custom_call.1} parent=28 // pred_check_branch
            %124 = sbr.rel (%p121) target = $region35
          $region34: #{tpu_custom_call.1} parent=28 // pred_region
            %s140 = sand.u32 1, 7
            %p141 = scmp.eq.s32.totalorder %s140, 0
            %p142 = pneg %p141
            // Predicated region
            $region47: #{tpu_custom_call.1} parent=34 // pred_check
              _
            $region48: #{tpu_custom_call.1} parent=34 // pred_check_branch
              %144 = sbr.rel (%p141) target = $region50
            $region49: #{tpu_custom_call.1} parent=34 // pred_region
              %s145 = sand.u32 1, 7
              %s146 = ssub.s32 1, %s145
              %s147 = scalar_lea.vmem %s117, %s146
              %s148 = ssub.s32 1, %s145
              %s149 = scalar_lea.vmem %s118, %s148 [#allocation2]
              %s150 = sshll.u32 1, %s145
              %s151 = ssub.s32 %s150, 1
              loop: start=0, step=1, limit=1
              $region51: #{tpu_custom_call.1} parent=49 // loop_pre_header
                _
              $region52: #{tpu_custom_call.1} parent=49 // loop_header
                %s153 = sphi 0, %s157
                %p154 = scmp.ge.s32.totalorder %s153, 1
                %s158 = sphi %s147, %s147
                %s159 = sphi %s149, %s149
              $region53: #{tpu_custom_call.1} parent=49 // loop_header_branch
                %156 = sbr.rel (%p154) target = $region57
              $region54: #{tpu_custom_call.1} parent=49 // loop_body
                %v160 = vld [vmem:[%s158] sm:%s151]
                %161 = vst [vmem:[%s159] sm:%s151] %v160
              $region55: #{tpu_custom_call.1} parent=49 // loop_footer
                %s157 = sadd.s32 1, %s153
              $region56: #{tpu_custom_call.1} parent=49 // loop_footer_branch
                %152 = sbr.rel target = $region52
              $region57: #{tpu_custom_call.1} parent=49 // loop_exit
                _
            $region50: #{tpu_custom_call.1} parent=34 // pred_fallthru
              _
          $region35: #{tpu_custom_call.1} parent=28 // pred_fallthru
            _
          // Predicated region
          $region36: #{tpu_custom_call.1} parent=28 // pred_check
            %p125 = pneg %p121
          $region37: #{tpu_custom_call.1} parent=28 // pred_check_branch
            %127 = sbr.rel (%p125) target = $region39
          $region38: #{tpu_custom_call.1} parent=28 // pred_region
            %s128 = sshll.u32 1, 1
            %s129 = ssub.s32 %s128, 1
            loop: start=0, step=1, limit=1
            $region40: #{tpu_custom_call.1} parent=38 // loop_pre_header
              _
            $region41: #{tpu_custom_call.1} parent=38 // loop_header
              %s131 = sphi 0, %s135
              %p132 = scmp.ge.s32.totalorder %s131, 1
              %s136 = sphi %s117, %s117
              %s137 = sphi %s118, %s118
            $region42: #{tpu_custom_call.1} parent=38 // loop_header_branch
              %134 = sbr.rel (%p132) target = $region46
            $region43: #{tpu_custom_call.1} parent=38 // loop_body
              %v138 = vld [vmem:[%s136] sm:%s129]
              %139 = vst [vmem:[%s137] sm:%s129] %v138
            $region44: #{tpu_custom_call.1} parent=38 // loop_footer
              %s135 = sadd.s32 1, %s131
            $region45: #{tpu_custom_call.1} parent=38 // loop_footer_branch
              %130 = sbr.rel target = $region41
            $region46: #{tpu_custom_call.1} parent=38 // loop_exit
              _
          $region39: #{tpu_custom_call.1} parent=28 // pred_fallthru
            _
          // Predicated region
          $region58: #{tpu_custom_call.1} parent=28 // pred_check
            _
          $region59: #{tpu_custom_call.1} parent=28 // pred_check_branch
            %164 = sbr.rel (0) target = $region61
          $region60: #{tpu_custom_call.1} parent=28 // pred_region
            %165 = vsyncadd %s119, 16
          $region61: #{tpu_custom_call.1} parent=28 // pred_fallthru
            _
        $region29: #{tpu_custom_call.1} parent=23 // loop_footer
          %s108 = sadd.s32 1, %s104
        $region30: #{tpu_custom_call.1} parent=23 // loop_footer_branch
          %103 = sbr.rel target = $region26
        $region31: #{tpu_custom_call.1} parent=23 // loop_exit
          _
        loop: start=0, step=1, limit=8
        $region62: #{tpu_custom_call.1} parent=23 // loop_pre_header
          _
        $region63: #{tpu_custom_call.1} parent=23 // loop_header
          %s167 = sphi 0, %s171
          %p168 = scmp.ge.s32.totalorder %s167, 8
        $region64: #{tpu_custom_call.1} parent=23 // loop_header_branch
          %170 = sbr.rel (%p168) target = $region68
        $region65: #{tpu_custom_call.1} parent=23 // loop_body
          %s172 = sshra.s32 %s167, 7
          %s173 = sand.u32 %s167, 127
          %s174 = sadd.s32 %s172, %s23
          %s175 = smul.u32 %s174, 128
          %s176 = sshra.s32 %s167, 7
          %s177 = sand.u32 %s167, 127
          %s178 = sadd.s32 %s175, %s177
          %s179 = sld [smem:[#allocation5 + %s178]]
          %s180 = scalar_lea.sflag [#allocation3], %s167
          %182 = dma.done %s180, 16
        $region66: #{tpu_custom_call.1} parent=23 // loop_footer
          %s171 = sadd.s32 1, %s167
        $region67: #{tpu_custom_call.1} parent=23 // loop_footer_branch
          %166 = sbr.rel target = $region63
        $region68: #{tpu_custom_call.1} parent=23 // loop_exit
          _
        %v183 = vld [vmem:[#allocation2] sm:$0xff]
        %v184 = vld [vmem:[%s1] sm:$0xff]
        %v185 = vadd.f32 %v183, %v184
        %vm186 = vcmask 261120
        %187 = vst.msk [vmem:[%s102] sm:$0xff] %vm186, %v185
        %s188 = sand.u32 %s52, 1
        %s189 = scalar_lea.sflag [#allocation7], %s188
        %s190 = sand.u32 %s52, 1
        %s191 = smul.addr %s190, 8
        %s192 = scalar_lea.vmem [#allocation6], %s191
        // Predicated region
        $region69: #{tpu_custom_call.1} parent=23 // pred_check
          %p193 = pneg %p62
        $region70: #{tpu_custom_call.1} parent=23 // pred_check_branch
          %195 = sbr.rel (%p193) target = $region72
        $region71: #{tpu_custom_call.1} parent=23 // pred_region
          %s197 = ssub.s32 128, 128
          %198 = vsyncadd %s189, %s197
          %s199 = smul.addr %s23, 128
          %s200 = scalar_lea.hbm %s3, %s199
          %s202 = sshll.u32 %s192, 4
          %s203 = int_to_ptr.vmem [resolvable:$true] %s202
          %205 = dma.vmem_to_hbm [thread:$0]  %s203, 128, %s200, %s189
        $region72: #{tpu_custom_call.1} parent=23 // pred_fallthru
          _
      $region24: #{tpu_custom_call.1} parent=5 // pred_fallthru
        _
      %p206 = scmp.le.s32.totalorder 2, %s18
      // Predicated region
      $region73: #{tpu_custom_call.1} parent=5 // pred_check
        %p207 = pneg %p206
      $region74: #{tpu_custom_call.1} parent=5 // pred_check_branch
        %209 = sbr.rel (%p207) target = $region76
      $region75: #{tpu_custom_call.1} parent=5 // pred_region
        %s210 = ssub.s32 %s18, 2
        // Predicated region
        $region77: #{tpu_custom_call.1} parent=75 // pred_check
          %p211 = pneg %p68
        $region78: #{tpu_custom_call.1} parent=75 // pred_check_branch
          %213 = sbr.rel (%p211) target = $region80
        $region79: #{tpu_custom_call.1} parent=75 // pred_region
          %s214 = sand.u32 %s53, 1
          %s215 = scalar_lea.sflag [#allocation7], %s214
          %s216 = sand.u32 %s53, 1
          %s217 = smul.addr %s216, 8
          %s218 = scalar_lea.vmem [#allocation6], %s217
          %219 = dma.done %s215, 128
        $region80: #{tpu_custom_call.1} parent=75 // pred_fallthru
          _
      $region76: #{tpu_custom_call.1} parent=5 // pred_fallthru
        _
    $region6: #{tpu_custom_call.1} parent=1 // loop_footer
      %s22 = sadd.s32 1, %s18
    $region7: #{tpu_custom_call.1} parent=1 // loop_footer_branch
      %17 = sbr.rel target = $region3
    $region8: #{tpu_custom_call.1} parent=1 // loop_exit
      _
    %220 = vsyncpa [#allocation7], 1
    %s221 = scalar_lea.sflag [#allocation7], 1
    %222 = vsyncpa %s221, 1
  %223 = vsyncmov [#allocation3]
  %s224 = vpop.sfrf %223
  %p225 = scmp.eq.s32.totalorder %s224, 0
  %p226 = pneg %p225
  %228 = shalt.err (%p226)
  %s229 = scalar_lea.sflag [#allocation3], 1
  %230 = vsyncmov %s229
  %s231 = vpop.sfrf %230
  %p232 = scmp.eq.s32.totalorder %s231, 0
  %p233 = pneg %p232
  %235 = shalt.err (%p233)
  %s236 = scalar_lea.sflag [#allocation3], 2
  %237 = vsyncmov %s236
  %s238 = vpop.sfrf %237
  %p239 = scmp.eq.s32.totalorder %s238, 0
  %p240 = pneg %p239
  %242 = shalt.err (%p240)
  %s243 = scalar_lea.sflag [#allocation3], 3
  %244 = vsyncmov %s243
  %s245 = vpop.sfrf %244
  %p246 = scmp.eq.s32.totalorder %s245, 0
  %p247 = pneg %p246
  %249 = shalt.err (%p247)
  %s250 = scalar_lea.sflag [#allocation3], 4
  %251 = vsyncmov %s250
  %s252 = vpop.sfrf %251
  %p253 = scmp.eq.s32.totalorder %s252, 0
  %p254 = pneg %p253
  %256 = shalt.err (%p254)
  %s257 = scalar_lea.sflag [#allocation3], 5
  %258 = vsyncmov %s257
  %s259 = vpop.sfrf %258
  %p260 = scmp.eq.s32.totalorder %s259, 0
  %p261 = pneg %p260
  %263 = shalt.err (%p261)
  %s264 = scalar_lea.sflag [#allocation3], 6
  %265 = vsyncmov %s264
  %s266 = vpop.sfrf %265
  %p267 = scmp.eq.s32.totalorder %s266, 0
  %p268 = pneg %p267
  %270 = shalt.err (%p268)
  %s271 = scalar_lea.sflag [#allocation3], 7
  %272 = vsyncmov %s271
  %s273 = vpop.sfrf %272
  %p274 = scmp.eq.s32.totalorder %s273, 0
  %p275 = pneg %p274
  %277 = shalt.err (%p275)

</llo_original>
